<compile_context>
chip_gen: v6e
topology: v6e:2x2x1
jax: 0.10.0
libtpu: 0.0.40
codegen_flags: <defaults>
</compile_context>

<pallas_src>
import jax
import jax.numpy as jnp
from jax.experimental import pallas as pl
from jax.experimental.pallas import tpu as pltpu


_TARGET_BLOCK_BYTES = 4 << 20   # ~4 MiB per block -> ~16 MiB double-buffered (in+out)
_VMEM_LIMIT_BYTES = 32 << 20    # raise v5e's 16 MiB scoped default; matches v6e/v7x


def _round_up(v, m):
    return ((v + m - 1) // m) * m


def _squeeze_kernel(len_ref, x_ref, o_ref):
    # len_ref: (bt, 1) int32 per-row lengths, pre-scaled by D (flat-column units)
    # x_ref / o_ref: (bt, tile_c) block of the flattened (B, T*D) input/output
    j = pl.program_id(1)
    tile_c = o_ref.shape[1]
    col = j * tile_c + jax.lax.broadcasted_iota(jnp.int32, (1, tile_c), 1)
    mask = col < len_ref[...]                    # (bt,1) vs (1,tile_c) -> (bt,tile_c)
    xv = x_ref[...]
    o_ref[...] = jnp.where(mask, xv, jnp.asarray(0, xv.dtype))


def squeeze_embedding(x, x_len, max_len=None, donate_x=False):
    """JAX/Pallas equivalent of SqueezeEmbedding.forward(x, x_len).

    x:        (B, T, D) batch-first embeddings
    x_len:    (B,) int lengths
    max_len:  static Python int = max(x_len). If None, uses T (same values,
              trailing columns zeroed). Kept static so the forward path never
              does a device->host round-trip.
    donate_x: if True and max_len == T, alias the output onto the input
              buffer (caller must not reuse x; pair with jit donation).
    """
    B, T, D = x.shape
    if max_len is None:
        max_len = T
    max_len = int(max_len)
    if max_len <= 0:                     # degenerate: all-empty sequences
        return jnp.zeros((B, 0, D), dtype=x.dtype)
    max_len = min(max_len, T)

    # Flatten the minor dims (free, row-major collapse) -> lane-dense blocks.
    c_in = T * D
    c_out = max_len * D
    x_flat = x.reshape(B, c_in)
    len_flat = (x_len.astype(jnp.int32) * D).reshape(B, 1)

    itemsize = x_flat.dtype.itemsize
    sub = {4: 8, 2: 16, 1: 32}.get(itemsize, 8)   # sublane packing granule

    # Base batch-row tile (block dim == full dim is legal when B < sub).
    bt = B if B < sub else sub

    c_out_pad = _round_up(c_out, 128)
    target_elems = max(1, _TARGET_BLOCK_BYTES // itemsize)

    # Column tile: multiple of 128, no bigger than the ~4 MiB-per-block target.
    tile_c_cap = max(128, ((target_elems // bt) // 128) * 128)
    if tile_c_cap >= c_out_pad:
        # Single column tile; grow the batch tile toward the block-size target.
        tile_c = c_out_pad
        want_bt = max(bt, (max(1, target_elems // tile_c) // sub) * sub)
        want_bt = min(want_bt, B)
        if B > sub:
            # Keep >= 2 steps on the (parallel) batch axis so both v7x
            # TensorCores get work when the column grid is 1.
            two_step_cap = _round_up(pl.cdiv(B, 2), sub)
            want_bt = min(want_bt, max(sub, two_step_cap))
        bt = max(bt, want_bt)
    else:
        # Split columns evenly into 128-multiples: avoids a tiny ragged tail
        # tile that would pay full per-step overhead for almost no data.
        n_col = pl.cdiv(c_out_pad, tile_c_cap)
        tile_c = _round_up(pl.cdiv(c_out_pad, n_col), 128)

    grid = (pl.cdiv(B, bt), pl.cdiv(c_out, tile_c))

    # Advisory cost hint: pure bandwidth-bound elementwise select.
    cost = pl.CostEstimate(
        flops=B * c_out,
        transcendentals=0,
        bytes_accessed=2 * B * c_out * itemsize + B * 4,
    )

    io_aliases = {}
    if donate_x and max_len == T and x_flat.shape == (B, c_out):
        io_aliases = {1: 0}   # write masked result in place over x_flat

    out_flat = pl.pallas_call(
        _squeeze_kernel,
        out_shape=jax.ShapeDtypeStruct((B, c_out), x.dtype),
        grid_spec=pltpu.PrefetchScalarGridSpec(
            num_scalar_prefetch=0,
            grid=grid,
            in_specs=[
                pl.BlockSpec((bt, 1), lambda i, j: (i, 0)),        # lengths*D
                pl.BlockSpec((bt, tile_c), lambda i, j: (i, j)),   # x (flattened)
            ],
            out_specs=pl.BlockSpec((bt, tile_c), lambda i, j: (i, j)),
        ),
        compiler_params=pltpu.CompilerParams(
            dimension_semantics=("parallel", "parallel"),
            vmem_limit_bytes=_VMEM_LIMIT_BYTES,
        ),
        cost_estimate=cost,
        input_output_aliases=io_aliases,
    )(len_flat, x_flat)

    return out_flat.reshape(B, max_len, D)


if __name__ == "__main__":
    key = jax.random.PRNGKey(0)
    k1, k2, _ = jax.random.split(key, 3)

    # Case 1: f32, static max_len = max(lens) (no device sync).
    B, T, D = 8, 16, 32
    x = jax.random.normal(k1, (B, T, D), dtype=jnp.float32)
    lens = [5, 12, 3, 9, 16, 1, 7, 12]
    max_len = max(lens)
    x_len = jnp.array(lens, dtype=jnp.int32)

    out = jax.block_until_ready(squeeze_embedding(x, x_len, max_len=max_len))
    mask = jnp.arange(max_len)[None, :, None] < x_len[:, None, None]
    ref = jnp.where(mask, x[:, :max_len, :], 0.0)
    assert out.shape == (B, max_len, D), out.shape
    assert out.dtype == x.dtype
    assert jnp.allclose(out, ref), "case 1 mismatch vs reference"

    # Case 2: ragged batch (B % bt != 0), exercises grown-bt + >=2-step grid.
    B2, T2, D2 = 20, 16, 160
    x2 = jax.random.normal(k2, (B2, T2, D2), dtype=jnp.float32)
    lens2 = [(3 * i) % T2 + 1 for i in range(B2)]
    ml2 = max(lens2)
    xl2 = jnp.array(lens2, dtype=jnp.int32)
    out2 = jax.block_until_ready(squeeze_embedding(x2, xl2, max_len=ml2))
    mask2 = jnp.arange(ml2)[None, :, None] < xl2[:, None, None]
    ref2 = jnp.where(mask2, x2[:, :ml2, :], 0.0)
    assert jnp.allclose(out2, ref2), "case 2 mismatch vs reference"

    # Case 3: bf16, max_len=None (full-width masked output).
    xb = x.astype(jnp.bfloat16)
    out3 = jax.block_until_ready(squeeze_embedding(xb, x_len))
    mask_full = jnp.arange(T)[None, :, None] < x_len[:, None, None]
    ref3 = jnp.where(mask_full, xb, jnp.asarray(0, jnp.bfloat16))
    assert out3.shape == (B, T, D)
    assert jnp.array_equal(out3, ref3), "case 3 mismatch vs reference"

    # Case 4: in-place alias path (max_len == T) under jit donation.
    f_alias = jax.jit(
        lambda xx, ll: squeeze_embedding(xx, ll, donate_x=True),
        donate_argnums=(0,),
    )
    x_copy = x + 0.0                      # fresh, donatable buffer
    out4 = jax.block_until_ready(f_alias(x_copy, x_len))
    ref4 = jnp.where(mask_full, x, 0.0)
    assert jnp.allclose(out4, ref4), "case 4 mismatch vs reference"

    print("KERNEL_OK")
</pallas_src>

<mosaic_0001>
module attributes {stable_mosaic.version = 11 : i64} {
  func.func @_squeeze_kernel(%arg0: i32, %arg1: i32, %arg2: memref<8x1xi32, #tpu.memory_space<vmem>>, %arg3: memref<8x512xf32, #tpu.memory_space<vmem>>, %arg4: memref<8x512xf32, #tpu.memory_space<vmem>>) attributes {dimension_semantics = [#tpu.dimension_semantics<parallel>, #tpu.dimension_semantics<parallel>], iteration_bounds = array<i64: 1, 1>, scalar_prefetch = 0 : i64, scratch_operands = 0 : i64, tpu.core_type = #tpu.core_type<tc>, window_params = [{transform_indices = @transform_0, window_bounds = array<i64: 8, 1>}, {transform_indices = @transform_1, window_bounds = array<i64: 8, 512>}, {transform_indices = @transform_2, window_bounds = array<i64: 8, 512>}]} {
    %c512_i32 = arith.constant 512 : i32
    %0 = arith.muli %arg1, %c512_i32 : i32
    %1 = tpu.iota {dimensions = array<i32: 1>} : vector<1x512xi32>
    %2 = vector.broadcast %0 : i32 to vector<1x512xi32>
    %3 = arith.addi %2, %1 : vector<1x512xi32>
    %c0 = arith.constant 0 : index
    %c0_0 = arith.constant 0 : index
    %4 = vector.load %arg2[%c0, %c0_0] : memref<8x1xi32, #tpu.memory_space<vmem>>, vector<8x1xi32>
    %5 = vector.broadcast %3 : vector<1x512xi32> to vector<8x512xi32>
    %6 = vector.broadcast %4 : vector<8x1xi32> to vector<8x512xi32>
    %7 = arith.cmpi slt, %5, %6 : vector<8x512xi32>
    %c0_1 = arith.constant 0 : index
    %c0_2 = arith.constant 0 : index
    %8 = vector.load %arg3[%c0_1, %c0_2] : memref<8x512xf32, #tpu.memory_space<vmem>>, vector<8x512xf32>
    %cst = arith.constant 0.000000e+00 : f32
    %9 = vector.broadcast %cst : f32 to vector<8x512xf32>
    %10 = arith.select %7, %8, %9 : vector<8x512xi1>, vector<8x512xf32>
    %c0_3 = arith.constant 0 : index
    %c0_4 = arith.constant 0 : index
    %11 = vector.load %arg4[%c0_3, %c0_4] : memref<8x512xf32, #tpu.memory_space<vmem>>, vector<8x512xf32>
    tpu.vector_store %arg4[%c0_3, %c0_4], %10 {strides = array<i32>} : memref<8x512xf32, #tpu.memory_space<vmem>>, vector<8x512xf32>,
    return
  }
  func.func @transform_0(%arg0: i32, %arg1: i32) -> (i32, i32) {
    %c0_i32 = arith.constant 0 : i32
    %c0_i32_0 = arith.constant 0 : i32
    return %arg0, %c0_i32 : i32, i32
  }
  func.func @transform_1(%arg0: i32, %arg1: i32) -> (i32, i32) {
    %c0_i32 = arith.constant 0 : i32
    return %arg0, %arg1 : i32, i32
  }
  func.func @transform_2(%arg0: i32, %arg1: i32) -> (i32, i32) {
    %c0_i32 = arith.constant 0 : i32
    return %arg0, %arg1 : i32, i32
  }
}

</mosaic_0001>

<llo_original>
// kernel: tpu_custom_call.1
$region0: #{tpu_custom_call.1}
  #allocation0 [shape = 'u32[]', space=smem, size = 0x4, offset = 0x4, fixed_abs, tag = 'smem constant byte address 0x4 - core index']
  #allocation1 [shape = 'u32[144,128]{1,0:T(1,128)}', space=vmem, size = 0x12000, scoped, tag = 'internal scratch']
  %s0 = inlined_call_operand.vmem [shape: s32[8,1], index: 0, kind: input, shape index: {}]
  %s1 = inlined_call_operand.hbm [shape: f32[8,512], index: 1, kind: input, shape index: {}]
  %s2 = inlined_call_operand.hbm [shape: f32[8,512], index: 2, kind: output, shape index: {}]
  %s3 = sld [smem:[#allocation0]]
  $region22: #{tpu_custom_call.1} parent=0
    _
  %s5 = ssub.s32 1, %s3
  %s6 = scalar_select 0, %s5, %s3
  $region1: #{tpu_custom_call.1} parent=0
    #allocation2 [shape = 'u8[16384]{0}', space=vmem, size = 0x4000, scoped, tag = 'input window, operand 1, single buffered']
    #allocation3 [shape = 's32[1]{0}', space=sflag, size = 0x4, scoped, tag = 'scoped memory for tpu_custom_call.1']
    #allocation4 [shape = 's32[1]{0}', space=sflag, size = 0x4, scoped, tag = 'scoped memory for tpu_custom_call.1']
    #allocation5 [shape = 'u8[16384]{0}', space=vmem, size = 0x4000, scoped, tag = 'output window, operand 0, single buffered']
    %7 = vsyncpa [#allocation3], 0
    %8 = vsyncpa [#allocation4], 0
    // Predicated region
    $region2: #{tpu_custom_call.1} parent=1 // pred_check
      _
    $region3: #{tpu_custom_call.1} parent=1 // pred_check_branch
      %10 = sbr.rel (0) target = $region5
    $region4: #{tpu_custom_call.1} parent=1 // pred_region
      _
    $region5: #{tpu_custom_call.1} parent=1 // pred_fallthru
      _
    // Predicated region
    $region6: #{tpu_custom_call.1} parent=1 // pred_check
      _
    $region7: #{tpu_custom_call.1} parent=1 // pred_check_branch
      %12 = sbr.rel (0) target = $region9
    $region8: #{tpu_custom_call.1} parent=1 // pred_region
      %s14 = ssub.s32 512, 512
      %15 = vsyncadd [#allocation3], %s14
      %s17 = sshll.u32 [#allocation2], 4
      %s18 = int_to_ptr.vmem [resolvable:$true] %s17
      %20 = dma.hbm_to_vmem [thread:$0]  %s1, 512, %s18, [#allocation3]
    $region9: #{tpu_custom_call.1} parent=1 // pred_fallthru
      _
    // Predicated region
    $region10: #{tpu_custom_call.1} parent=1 // pred_check
      _
    $region11: #{tpu_custom_call.1} parent=1 // pred_check_branch
      %22 = sbr.rel (0) target = $region13
    $region12: #{tpu_custom_call.1} parent=1 // pred_region
      %23 = dma.done [#allocation3], 512
    $region13: #{tpu_custom_call.1} parent=1 // pred_fallthru
      _
    %s24 = smul.u32 0, 512
    %v25 = vlaneseq
    %v26 = vand.u32 %v25, 127
    %v27 = vadd.s32 %v26, 128
    %v28 = vadd.s32 %v26, 256
    %v29 = vadd.s32 %v26, 384
    %v30 = vstv %s24
    %v31 = vadd.s32 %v30, %v26
    %v32 = vadd.s32 %v30, %v27
    %v33 = vadd.s32 %v30, %v28
    %v34 = vadd.s32 %v30, %v29
    %v35 = vld [vmem:[%s0] sm:$0xff]
    %36 = vset.pattern.permute.xlu0 0
    %37 = vperm.xlu0 %36, %v35
    %v38 = vpop.permute.xlu0 %37
    %vm39 = vcmp.lt.s32.totalorder %v31, %v38
    %vm40 = vcmp.lt.s32.totalorder %v32, %v38
    %vm41 = vcmp.lt.s32.totalorder %v33, %v38
    %vm42 = vcmp.lt.s32.totalorder %v34, %v38
    %v43 = vld [vmem:[#allocation2] sm:$0xff]
    %v44 = vld [vmem:[#allocation2 + $0x8] sm:$0xff]
    %v45 = vld [vmem:[#allocation2 + $0x10] sm:$0xff]
    %v46 = vld [vmem:[#allocation2 + $0x18] sm:$0xff]
    %v47 = vsel %vm39, %v43, 0.0
    %v48 = vsel %vm40, %v44, 0.0
    %v49 = vsel %vm41, %v45, 0.0
    %v50 = vsel %vm42, %v46, 0.0
    %51 = vst [vmem:[#allocation5] sm:$0xff] %v47
    %52 = vst [vmem:[#allocation5 + $0x8] sm:$0xff] %v48
    %53 = vst [vmem:[#allocation5 + $0x10] sm:$0xff] %v49
    %54 = vst [vmem:[#allocation5 + $0x18] sm:$0xff] %v50
    // Predicated region
    $region14: #{tpu_custom_call.1} parent=1 // pred_check
      _
    $region15: #{tpu_custom_call.1} parent=1 // pred_check_branch
      %56 = sbr.rel (0) target = $region17
    $region16: #{tpu_custom_call.1} parent=1 // pred_region
      %s58 = ssub.s32 512, 512
      %59 = vsyncadd [#allocation4], %s58
      %s61 = sshll.u32 [#allocation5], 4
      %s62 = int_to_ptr.vmem [resolvable:$true] %s61
      %64 = dma.vmem_to_hbm [thread:$0]  %s62, 512, %s2, [#allocation4]
    $region17: #{tpu_custom_call.1} parent=1 // pred_fallthru
      _
    // Predicated region
    $region18: #{tpu_custom_call.1} parent=1 // pred_check
      _
    $region19: #{tpu_custom_call.1} parent=1 // pred_check_branch
      %66 = sbr.rel (0) target = $region21
    $region20: #{tpu_custom_call.1} parent=1 // pred_region
      %67 = dma.done [#allocation4], 512
    $region21: #{tpu_custom_call.1} parent=1 // pred_fallthru
      _
    %68 = vsyncpa [#allocation3], 1
    %69 = vsyncpa [#allocation4], 1

</llo_original>
